<compile_context>
chip_gen: v5e
topology: v5e:2x2
jax: 0.10.0
libtpu: 0.0.40
codegen_flags: <defaults>
</compile_context>

<pallas_src>
from functools import partial

import jax
import jax.numpy as jnp
import numpy as np
from jax.experimental import pallas as pl
from jax.experimental.pallas import tpu as pltpu


# ---------------------------------------------------------------------------
# Pallas kernel
# ---------------------------------------------------------------------------
def _hconv_kernel(x_ref, w_ref, o_ref, *, K, D, stride, neg_slope):
    """One output z-slice of the horizontal conv stack (grid = (Zout,)).

    x_ref: (Zp, N, Dp, Hp*Cin)            full padded input, VMEM-resident (compute dtype)
    w_ref: (Zout, K*K, Hp*Cin, H*Cout)    banded weights, VMEM-resident    (compute dtype)
    o_ref: (1, N, D, H*Cout)              lane-dense output z-slice zi
    """
    zi = pl.program_id(0)

    acc = None
    for kz in range(K):
        # dynamic index on the (untiled) leading axis: one z-slab of the resident input
        slab = x_ref[zi * stride + kz]                 # (N, Dp, Hp*Cin)
        for kd in range(K):
            lhs = slab[:, kd:kd + D, :]                # (N, D, Hp*Cin)  sublane-window slice
            rhs = w_ref[zi, kz * K + kd]               # (Hp*Cin, H*Cout)
            part = jax.lax.dot_general(
                lhs, rhs,
                dimension_numbers=(((2,), (0,)), ((), ())),
                preferred_element_type=jnp.float32)    # (N, D, H*Cout) f32
            acc = part if acc is None else acc + part

    out = jnp.where(acc > 0, acc, neg_slope * acc)     # LeakyReLU(neg_slope), f32
    o_ref[...] = out[None].astype(o_ref.dtype)         # single full-width (lane-dense) store


# ---------------------------------------------------------------------------
# VMEM budget helpers (generation-aware)
# ---------------------------------------------------------------------------
def _tile_padded_bytes(shape, dtype):
    """VMEM bytes of `shape` after (sublane, lane) tile padding of the 2 minor dims."""
    itemsize = np.dtype(dtype).itemsize
    sublane = {4: 8, 2: 16, 1: 32}.get(itemsize, 8)
    dims = (1, 1) + tuple(int(d) for d in shape)
    major = int(np.prod(dims[:-2], dtype=np.int64))
    s = -(-dims[-2] // sublane) * sublane
    l = -(-dims[-1] // 128) * 128
    return major * s * l * itemsize


def _vmem_capacity_bytes():
    try:
        info = pltpu.get_tpu_info()
        cap = getattr(info, "vmem_capacity_bytes", None)
        if cap:
            return int(cap)
    except Exception:
        pass
    return 64 * 2**20          # conservative fallback, valid on v5e/v6e/v7x


def _vmem_limit_bytes(blocks):
    est = sum(_tile_padded_bytes(s, dt) for s, dt in blocks)
    # ~85% of physical VMEM: leaves compiler-internal scratch headroom (matters most on
    # v7x's 64 MiB) while letting v5e/v6e (128 MiB) go well past the old 64 MiB clamp.
    ceiling = int(_vmem_capacity_bytes() * 0.85)
    return int(min(ceiling, max(32 * 2**20, 2 * est)))


# ---------------------------------------------------------------------------
# Wrappers
# ---------------------------------------------------------------------------
def horizontal_conv_3d(x, weights, *, kernel_size=3, stride=1,
                       negative_slope=0.2, compute_dtype=jnp.bfloat16):
    """Stack of per-z-slice Conv3d(K, padding=(p,p,0), bias=False) + LeakyReLU.

    x:       (N, Cin, D, H, Z)            PyTorch NCDHW layout
    weights: (Zout, Cout, Cin, K, K, K)   one Conv3d weight per output z-slice
             (axes: zi, co, ci, kd, kh, kz)
    returns: (N, Cout, D, H, Zout)
    """
    N, Cin, D, H, Z = x.shape
    K = kernel_size
    p = (K - 1) // 2
    Zout, Cout = int(weights.shape[0]), int(weights.shape[1])
    assert weights.shape == (Zout, Cout, Cin, K, K, K), weights.shape

    # ---- layout glue (plain JAX): channels-last, zero-pad z/D/H, merge (Hp, Cin) lanes ----
    x_t = jnp.transpose(x, (4, 0, 2, 3, 1))                          # (Z, N, D, H, Cin)
    x_p = jnp.pad(x_t, ((p, p), (0, 0), (p, p), (p, p), (0, 0))).astype(compute_dtype)
    Zp, _, Dp, Hp, _ = x_p.shape
    if Zp < (Zout - 1) * stride + K:
        raise ValueError("padded z extent too small for the requested conv stack "
                         f"(Zp={Zp}, need >= {(Zout - 1) * stride + K})")
    xm = x_p.reshape(Zp, N, Dp, Hp * Cin)                            # free row-major merge

    # ---- banded ("Toeplitz over h") weights: contract (hp, ci) -> produce (h, co) ----
    # T[zi, kz, kd, hp, ci, h, co] = weights[zi, co, ci, kd, hp - h, kz]  if 0 <= hp-h < K
    w_t = jnp.transpose(weights, (0, 5, 3, 4, 2, 1))                 # (Zout, kz, kd, kh, Cin, Cout)
    sel = (jnp.arange(Hp)[:, None, None]
           == (jnp.arange(K)[None, :, None]
               + jnp.arange(H)[None, None, :])).astype(w_t.dtype)    # (Hp, K, H) one-hot
    T = jnp.einsum("pkh,zabkco->zabpcho", sel, w_t)                  # (Zout,K,K,Hp,Cin,H,Cout)
    T = T.reshape(Zout, K * K, Hp * Cin, H * Cout).astype(compute_dtype)

    in_block = (Zp, N, Dp, Hp * Cin)
    w_block = (Zout, K * K, Hp * Cin, H * Cout)
    out_block = (1, N, D, H * Cout)

    vmem_limit = _vmem_limit_bytes(
        [(in_block, compute_dtype)] * 2          # resident input (pipeline allocates 2 bufs)
        + [(w_block, compute_dtype)] * 2         # resident banded weights
        + [(out_block, x.dtype)] * 2)            # double-buffered output slice

    out = pl.pallas_call(
        partial(_hconv_kernel, K=K, D=D, stride=stride, neg_slope=negative_slope),
        out_shape=jax.ShapeDtypeStruct((Zout, N, D, H * Cout), x.dtype),
        grid_spec=pltpu.PrefetchScalarGridSpec(
            num_scalar_prefetch=0,
            grid=(Zout,),
            in_specs=[
                # full padded input, VMEM-resident (constant block index -> single DMA)
                pl.BlockSpec(in_block, lambda zi: (0, 0, 0, 0)),
                # all banded weights, VMEM-resident
                pl.BlockSpec(w_block, lambda zi: (0, 0, 0, 0)),
            ],
            out_specs=pl.BlockSpec(out_block, lambda zi: (zi, 0, 0, 0)),
        ),
        compiler_params=pltpu.CompilerParams(
            dimension_semantics=("parallel",),       # z-slices shard across v7x's 2 TCs
            vmem_limit_bytes=vmem_limit),
    )(xm, T)

    # wrapper glue back to PyTorch layout: free split of the merged lane dim, then transpose
    out = out.reshape(Zout, N, D, H, Cout)
    return jnp.transpose(out, (1, 4, 2, 3, 0))       # (N, Cout, D, H, Zout)


def rdb_horizontal_conv_3d(x, weights, *, kernel_size=3, stride=1,
                           negative_slope=0.2, compute_dtype=jnp.bfloat16):
    """Full RDB_Horizontal_Conv_3D.forward: conv stack then channel concat with x."""
    out = horizontal_conv_3d(x, weights, kernel_size=kernel_size, stride=stride,
                             negative_slope=negative_slope, compute_dtype=compute_dtype)
    if out.shape[-1] != x.shape[-1]:
        raise ValueError("number_of_z_layers must equal the input z extent for the concat")
    # channel concat is pure layout glue; left to XLA.
    return jnp.concatenate([x, out], axis=1)


# ---------------------------------------------------------------------------
# Pure-JAX reference of the module forward
# ---------------------------------------------------------------------------
def _reference_module(x, weights, *, kernel_size=3, stride=1, negative_slope=0.2):
    K = kernel_size
    p = (K - 1) // 2
    Zout = weights.shape[0]
    xp = jnp.pad(x, ((0, 0), (0, 0), (p, p), (p, p), (p, p)))
    outs = []
    for zi in range(Zout):
        sl = jax.lax.dynamic_slice_in_dim(xp, zi * stride, K, axis=4)
        o = jax.lax.conv_general_dilated(
            sl, weights[zi], window_strides=(1, 1, 1), padding="VALID",
            dimension_numbers=("NCDHW", "OIDHW", "NCDHW"))
        o = jnp.where(o > 0, o, negative_slope * o)
        outs.append(o[..., 0])
    return jnp.concatenate([x, jnp.stack(outs, axis=-1)], axis=1)


# ---------------------------------------------------------------------------
# Demo / self-check
# ---------------------------------------------------------------------------
if __name__ == "__main__":
    key = jax.random.PRNGKey(0)
    k_x, k_w = jax.random.split(key)

    # small shapes consistent with the module (number_of_z_layers == Z so the concat is valid)
    N, Cin, Cout, D, H, Z, K = 2, 4, 8, 16, 16, 6, 3
    Zout = Z

    x = jax.random.normal(k_x, (N, Cin, D, H, Z), dtype=jnp.float32)
    # deterministic Conv3d-style init (kaiming-uniform-like bound), one weight per conv
    fan_in = Cin * K * K * K
    bound = 1.0 / np.sqrt(fan_in)
    weights = jax.random.uniform(
        k_w, (Zout, Cout, Cin, K, K, K), dtype=jnp.float32, minval=-bound, maxval=bound)

    y_ref = _reference_module(x, weights, kernel_size=K)

    # exact-precision path (f32 operands) -> tight tolerance
    y_f32 = jax.block_until_ready(
        rdb_horizontal_conv_3d(x, weights, kernel_size=K, compute_dtype=jnp.float32))
    assert y_f32.shape == (N, Cin + Cout, D, H, Zout)
    np.testing.assert_allclose(np.asarray(y_f32), np.asarray(y_ref), rtol=1e-4, atol=1e-4)

    # MXU-native bf16-operand / f32-accumulate path (default) -> relaxed tolerance
    y_bf16 = jax.block_until_ready(rdb_horizontal_conv_3d(x, weights, kernel_size=K))
    np.testing.assert_allclose(np.asarray(y_bf16), np.asarray(y_ref), rtol=2e-2, atol=2e-2)

    print("KERNEL_OK")
</pallas_src>

<mosaic_0001>
module attributes {stable_mosaic.version = 11 : i64} {
  func.func @_hconv_kernel(%arg0: i32, %arg1: memref<8x2x18x72xf32, #tpu.memory_space<vmem>>, %arg2: memref<6x9x72x128xf32, #tpu.memory_space<vmem>>, %arg3: memref<1x2x16x128xf32, #tpu.memory_space<vmem>>) attributes {dimension_semantics = [#tpu.dimension_semantics<parallel>], iteration_bounds = array<i64: 6>, scalar_prefetch = 0 : i64, scratch_operands = 0 : i64, tpu.core_type = #tpu.core_type<tc>, window_params = [{pipeline_mode = #tpu.pipeline_mode<synchronous>, transform_indices = @transform_0, window_bounds = array<i64: 8, 2, 18, 72>}, {pipeline_mode = #tpu.pipeline_mode<synchronous>, transform_indices = @transform_1, window_bounds = array<i64: 6, 9, 72, 128>}, {transform_indices = @transform_2, window_bounds = array<i64: 1, 2, 16, 128>}]} {
    %c1_i32 = arith.constant 1 : i32
    %0 = arith.muli %arg0, %c1_i32 : i32
    %c0_i32 = arith.constant 0 : i32
    %1 = arith.addi %0, %c0_i32 : i32
    %2 = arith.index_cast %1 : i32 to index
    %c0 = arith.constant 0 : index
    %c0_0 = arith.constant 0 : index
    %c0_1 = arith.constant 0 : index
    %3 = vector.load %arg1[%2, %c0, %c0_0, %c0_1] : memref<8x2x18x72xf32, #tpu.memory_space<vmem>>, vector<1x2x18x72xf32>
    %4 = vector.shape_cast %3 : vector<1x2x18x72xf32> to vector<2x18x72xf32>
    %5 = vector.extract_strided_slice %4 {offsets = [0, 0, 0], sizes = [2, 16, 72], strides = [1, 1, 1]} : vector<2x18x72xf32> to vector<2x16x72xf32>
    %6 = arith.index_cast %arg0 : i32 to index
    %c0_2 = arith.constant 0 : index
    %c0_3 = arith.constant 0 : index
    %c0_4 = arith.constant 0 : index
    %7 = vector.load %arg2[%6, %c0_2, %c0_3, %c0_4] : memref<6x9x72x128xf32, #tpu.memory_space<vmem>>, vector<1x1x72x128xf32>
    %8 = vector.shape_cast %7 : vector<1x1x72x128xf32> to vector<72x128xf32>
    %cst = arith.constant dense<0.000000e+00> : vector<2x16x128xf32>
    %9 = tpu.matmul %5, %8, %cst {dimension_numbers = #tpu.dot_dimension_numbers<[2], [0], [0, 1], [1], [0, 0, 0, 1, 1, 1], [], []>} : vector<2x16x72xf32>, vector<72x128xf32>, vector<2x16x128xf32> -> vector<2x16x128xf32>
    %10 = vector.extract_strided_slice %4 {offsets = [0, 1, 0], sizes = [2, 16, 72], strides = [1, 1, 1]} : vector<2x18x72xf32> to vector<2x16x72xf32>
    %11 = arith.index_cast %arg0 : i32 to index
    %c1 = arith.constant 1 : index
    %c0_5 = arith.constant 0 : index
    %c0_6 = arith.constant 0 : index
    %12 = vector.load %arg2[%11, %c1, %c0_5, %c0_6] : memref<6x9x72x128xf32, #tpu.memory_space<vmem>>, vector<1x1x72x128xf32>
    %13 = vector.shape_cast %12 : vector<1x1x72x128xf32> to vector<72x128xf32>
    %cst_7 = arith.constant dense<0.000000e+00> : vector<2x16x128xf32>
    %14 = tpu.matmul %10, %13, %cst_7 {dimension_numbers = #tpu.dot_dimension_numbers<[2], [0], [0, 1], [1], [0, 0, 0, 1, 1, 1], [], []>} : vector<2x16x72xf32>, vector<72x128xf32>, vector<2x16x128xf32> -> vector<2x16x128xf32>
    %15 = arith.addf %9, %14 : vector<2x16x128xf32>
    %16 = vector.extract_strided_slice %4 {offsets = [0, 2, 0], sizes = [2, 16, 72], strides = [1, 1, 1]} : vector<2x18x72xf32> to vector<2x16x72xf32>
    %17 = arith.index_cast %arg0 : i32 to index
    %c2 = arith.constant 2 : index
    %c0_8 = arith.constant 0 : index
    %c0_9 = arith.constant 0 : index
    %18 = vector.load %arg2[%17, %c2, %c0_8, %c0_9] : memref<6x9x72x128xf32, #tpu.memory_space<vmem>>, vector<1x1x72x128xf32>
    %19 = vector.shape_cast %18 : vector<1x1x72x128xf32> to vector<72x128xf32>
    %cst_10 = arith.constant dense<0.000000e+00> : vector<2x16x128xf32>
    %20 = tpu.matmul %16, %19, %cst_10 {dimension_numbers = #tpu.dot_dimension_numbers<[2], [0], [0, 1], [1], [0, 0, 0, 1, 1, 1], [], []>} : vector<2x16x72xf32>, vector<72x128xf32>, vector<2x16x128xf32> -> vector<2x16x128xf32>
    %21 = arith.addf %15, %20 : vector<2x16x128xf32>
    %c1_i32_11 = arith.constant 1 : i32
    %22 = arith.muli %arg0, %c1_i32_11 : i32
    %c1_i32_12 = arith.constant 1 : i32
    %23 = arith.addi %22, %c1_i32_12 : i32
    %24 = arith.index_cast %23 : i32 to index
    %c0_13 = arith.constant 0 : index
    %c0_14 = arith.constant 0 : index
    %c0_15 = arith.constant 0 : index
    %25 = vector.load %arg1[%24, %c0_13, %c0_14, %c0_15] : memref<8x2x18x72xf32, #tpu.memory_space<vmem>>, vector<1x2x18x72xf32>
    %26 = vector.shape_cast %25 : vector<1x2x18x72xf32> to vector<2x18x72xf32>
    %27 = vector.extract_strided_slice %26 {offsets = [0, 0, 0], sizes = [2, 16, 72], strides = [1, 1, 1]} : vector<2x18x72xf32> to vector<2x16x72xf32>
    %28 = arith.index_cast %arg0 : i32 to index
    %c3 = arith.constant 3 : index
    %c0_16 = arith.constant 0 : index
    %c0_17 = arith.constant 0 : index
    %29 = vector.load %arg2[%28, %c3, %c0_16, %c0_17] : memref<6x9x72x128xf32, #tpu.memory_space<vmem>>, vector<1x1x72x128xf32>
    %30 = vector.shape_cast %29 : vector<1x1x72x128xf32> to vector<72x128xf32>
    %cst_18 = arith.constant dense<0.000000e+00> : vector<2x16x128xf32>
    %31 = tpu.matmul %27, %30, %cst_18 {dimension_numbers = #tpu.dot_dimension_numbers<[2], [0], [0, 1], [1], [0, 0, 0, 1, 1, 1], [], []>} : vector<2x16x72xf32>, vector<72x128xf32>, vector<2x16x128xf32> -> vector<2x16x128xf32>
    %32 = arith.addf %21, %31 : vector<2x16x128xf32>
    %33 = vector.extract_strided_slice %26 {offsets = [0, 1, 0], sizes = [2, 16, 72], strides = [1, 1, 1]} : vector<2x18x72xf32> to vector<2x16x72xf32>
    %34 = arith.index_cast %arg0 : i32 to index
    %c4 = arith.constant 4 : index
    %c0_19 = arith.constant 0 : index
    %c0_20 = arith.constant 0 : index
    %35 = vector.load %arg2[%34, %c4, %c0_19, %c0_20] : memref<6x9x72x128xf32, #tpu.memory_space<vmem>>, vector<1x1x72x128xf32>
    %36 = vector.shape_cast %35 : vector<1x1x72x128xf32> to vector<72x128xf32>
    %cst_21 = arith.constant dense<0.000000e+00> : vector<2x16x128xf32>
    %37 = tpu.matmul %33, %36, %cst_21 {dimension_numbers = #tpu.dot_dimension_numbers<[2], [0], [0, 1], [1], [0, 0, 0, 1, 1, 1], [], []>} : vector<2x16x72xf32>, vector<72x128xf32>, vector<2x16x128xf32> -> vector<2x16x128xf32>
    %38 = arith.addf %32, %37 : vector<2x16x128xf32>
    %39 = vector.extract_strided_slice %26 {offsets = [0, 2, 0], sizes = [2, 16, 72], strides = [1, 1, 1]} : vector<2x18x72xf32> to vector<2x16x72xf32>
    %40 = arith.index_cast %arg0 : i32 to index
    %c5 = arith.constant 5 : index
    %c0_22 = arith.constant 0 : index
    %c0_23 = arith.constant 0 : index
    %41 = vector.load %arg2[%40, %c5, %c0_22, %c0_23] : memref<6x9x72x128xf32, #tpu.memory_space<vmem>>, vector<1x1x72x128xf32>
    %42 = vector.shape_cast %41 : vector<1x1x72x128xf32> to vector<72x128xf32>
    %cst_24 = arith.constant dense<0.000000e+00> : vector<2x16x128xf32>
    %43 = tpu.matmul %39, %42, %cst_24 {dimension_numbers = #tpu.dot_dimension_numbers<[2], [0], [0, 1], [1], [0, 0, 0, 1, 1, 1], [], []>} : vector<2x16x72xf32>, vector<72x128xf32>, vector<2x16x128xf32> -> vector<2x16x128xf32>
    %44 = arith.addf %38, %43 : vector<2x16x128xf32>
    %c1_i32_25 = arith.constant 1 : i32
    %45 = arith.muli %arg0, %c1_i32_25 : i32
    %c2_i32 = arith.constant 2 : i32
    %46 = arith.addi %45, %c2_i32 : i32
    %47 = arith.index_cast %46 : i32 to index
    %c0_26 = arith.constant 0 : index
    %c0_27 = arith.constant 0 : index
    %c0_28 = arith.constant 0 : index
    %48 = vector.load %arg1[%47, %c0_26, %c0_27, %c0_28] : memref<8x2x18x72xf32, #tpu.memory_space<vmem>>, vector<1x2x18x72xf32>
    %49 = vector.shape_cast %48 : vector<1x2x18x72xf32> to vector<2x18x72xf32>
    %50 = vector.extract_strided_slice %49 {offsets = [0, 0, 0], sizes = [2, 16, 72], strides = [1, 1, 1]} : vector<2x18x72xf32> to vector<2x16x72xf32>
    %51 = arith.index_cast %arg0 : i32 to index
    %c6 = arith.constant 6 : index
    %c0_29 = arith.constant 0 : index
    %c0_30 = arith.constant 0 : index
    %52 = vector.load %arg2[%51, %c6, %c0_29, %c0_30] : memref<6x9x72x128xf32, #tpu.memory_space<vmem>>, vector<1x1x72x128xf32>
    %53 = vector.shape_cast %52 : vector<1x1x72x128xf32> to vector<72x128xf32>
    %cst_31 = arith.constant dense<0.000000e+00> : vector<2x16x128xf32>
    %54 = tpu.matmul %50, %53, %cst_31 {dimension_numbers = #tpu.dot_dimension_numbers<[2], [0], [0, 1], [1], [0, 0, 0, 1, 1, 1], [], []>} : vector<2x16x72xf32>, vector<72x128xf32>, vector<2x16x128xf32> -> vector<2x16x128xf32>
    %55 = arith.addf %44, %54 : vector<2x16x128xf32>
    %56 = vector.extract_strided_slice %49 {offsets = [0, 1, 0], sizes = [2, 16, 72], strides = [1, 1, 1]} : vector<2x18x72xf32> to vector<2x16x72xf32>
    %57 = arith.index_cast %arg0 : i32 to index
    %c7 = arith.constant 7 : index
    %c0_32 = arith.constant 0 : index
    %c0_33 = arith.constant 0 : index
    %58 = vector.load %arg2[%57, %c7, %c0_32, %c0_33] : memref<6x9x72x128xf32, #tpu.memory_space<vmem>>, vector<1x1x72x128xf32>
    %59 = vector.shape_cast %58 : vector<1x1x72x128xf32> to vector<72x128xf32>
    %cst_34 = arith.constant dense<0.000000e+00> : vector<2x16x128xf32>
    %60 = tpu.matmul %56, %59, %cst_34 {dimension_numbers = #tpu.dot_dimension_numbers<[2], [0], [0, 1], [1], [0, 0, 0, 1, 1, 1], [], []>} : vector<2x16x72xf32>, vector<72x128xf32>, vector<2x16x128xf32> -> vector<2x16x128xf32>
    %61 = arith.addf %55, %60 : vector<2x16x128xf32>
    %62 = vector.extract_strided_slice %49 {offsets = [0, 2, 0], sizes = [2, 16, 72], strides = [1, 1, 1]} : vector<2x18x72xf32> to vector<2x16x72xf32>
    %63 = arith.index_cast %arg0 : i32 to index
    %c8 = arith.constant 8 : index
    %c0_35 = arith.constant 0 : index
    %c0_36 = arith.constant 0 : index
    %64 = vector.load %arg2[%63, %c8, %c0_35, %c0_36] : memref<6x9x72x128xf32, #tpu.memory_space<vmem>>, vector<1x1x72x128xf32>
    %65 = vector.shape_cast %64 : vector<1x1x72x128xf32> to vector<72x128xf32>
    %cst_37 = arith.constant dense<0.000000e+00> : vector<2x16x128xf32>
    %66 = tpu.matmul %62, %65, %cst_37 {dimension_numbers = #tpu.dot_dimension_numbers<[2], [0], [0, 1], [1], [0, 0, 0, 1, 1, 1], [], []>} : vector<2x16x72xf32>, vector<72x128xf32>, vector<2x16x128xf32> -> vector<2x16x128xf32>
    %67 = arith.addf %61, %66 : vector<2x16x128xf32>
    %cst_38 = arith.constant 0.000000e+00 : f32
    %68 = vector.broadcast %cst_38 : f32 to vector<2x16x128xf32>
    %69 = arith.cmpf ogt, %67, %68 : vector<2x16x128xf32>
    %cst_39 = arith.constant 2.000000e-01 : f32
    %70 = vector.broadcast %cst_39 : f32 to vector<2x16x128xf32>
    %71 = arith.mulf %70, %67 : vector<2x16x128xf32>
    %72 = arith.select %69, %67, %71 : vector<2x16x128xi1>, vector<2x16x128xf32>
    %73 = vector.shape_cast %72 : vector<2x16x128xf32> to vector<1x2x16x128xf32>
    %c0_40 = arith.constant 0 : index
    %c0_41 = arith.constant 0 : index
    %c0_42 = arith.constant 0 : index
    %c0_43 = arith.constant 0 : index
    %74 = vector.load %arg3[%c0_40, %c0_41, %c0_42, %c0_43] : memref<1x2x16x128xf32, #tpu.memory_space<vmem>>, vector<1x2x16x128xf32>
    tpu.vector_store %arg3[%c0_40, %c0_41, %c0_42, %c0_43], %73 {strides = array<i32>} : memref<1x2x16x128xf32, #tpu.memory_space<vmem>>, vector<1x2x16x128xf32>,
    return
  }
  func.func @transform_0(%arg0: i32) -> (i32, i32, i32, i32) {
    %c0_i32 = arith.constant 0 : i32
    %c0_i32_0 = arith.constant 0 : i32
    %c0_i32_1 = arith.constant 0 : i32
    %c0_i32_2 = arith.constant 0 : i32
    %c0_i32_3 = arith.constant 0 : i32
    return %c0_i32, %c0_i32_0, %c0_i32_1, %c0_i32_2 : i32, i32, i32, i32
  }
  func.func @transform_1(%arg0: i32) -> (i32, i32, i32, i32) {
    %c0_i32 = arith.constant 0 : i32
    %c0_i32_0 = arith.constant 0 : i32
    %c0_i32_1 = arith.constant 0 : i32
    %c0_i32_2 = arith.constant 0 : i32
    %c0_i32_3 = arith.constant 0 : i32
    return %c0_i32, %c0_i32_0, %c0_i32_1, %c0_i32_2 : i32, i32, i32, i32
  }
  func.func @transform_2(%arg0: i32) -> (i32, i32, i32, i32) {
    %c0_i32 = arith.constant 0 : i32
    %c0_i32_0 = arith.constant 0 : i32
    %c0_i32_1 = arith.constant 0 : i32
    %c0_i32_2 = arith.constant 0 : i32
    return %arg0, %c0_i32, %c0_i32_0, %c0_i32_1 : i32, i32, i32, i32
  }
}

</mosaic_0001>

<llo_original>
// kernel: tpu_custom_call.1
$region0: #{tpu_custom_call.1}
  #allocation0 [shape = 'u32[]', space=smem, size = 0x4, offset = 0x4, fixed_abs, tag = 'smem constant byte address 0x4 - core index']
  #allocation1 [shape = 'u32[72,128]{1,0:T(1,128)}', space=vmem, size = 0x9000, scoped, tag = 'internal scratch']
  %s0 = inlined_call_operand.vmem [shape: f32[8,2,18,72], index: 0, kind: input, shape index: {}]
  %s1 = inlined_call_operand.hbm [shape: f32[6,9,72,128], index: 1, kind: input, shape index: {}]
  %s2 = inlined_call_operand.hbm [shape: f32[6,2,16,128], index: 2, kind: output, shape index: {}]
  %s3 = sld [smem:[#allocation0]]
  $region45: #{tpu_custom_call.1} parent=0
    _
  %s5 = ssub.s32 1, %s3
  %s6 = scalar_select 0, %s5, %s3
  $region1: #{tpu_custom_call.1} parent=0
    #allocation2 [shape = 'u8[1990656]{0}', space=vmem, size = 0x1e6000, scoped, tag = 'input window, operand 1, single buffered']
    #allocation3 [shape = 's32[2]{0}', space=sflag, size = 0x8, scoped, tag = 'scoped memory for tpu_custom_call.1']
    #allocation4 [shape = 's32[2]{0}', space=sflag, size = 0x8, scoped, tag = 'scoped memory for tpu_custom_call.1']
    #allocation5 [shape = 'u8[32768]{0}', space=vmem, size = 0x8000, scoped, tag = 'output window, operand 0']
    %7 = vsyncpa [#allocation3], 0
    %8 = vsyncpa [#allocation4], 0
    %s9 = scalar_lea.sflag [#allocation4], 1
    %10 = vsyncpa %s9, 0
    loop: start=0, step=1, limit=8
    $region2: #{tpu_custom_call.1} parent=1 // loop_pre_header
      _
    $region3: #{tpu_custom_call.1} parent=1 // loop_header
      %s12 = sphi 0, %s16
      %p13 = scmp.ge.s32.totalorder %s12, 8
      %s20 = sphi 0, %s20
      %s22 = sphi 0, %s20
      %s23 = sphi 0, %s22
      %s37 = sphi 0, %s23
      %s41 = sphi 0, %s41
      %s43 = sphi 0, %s41
      %s44 = sphi 0, %s43
      %s58 = sphi 0, %s44
      %s64 = sphi 0, %s66
      %s67 = sphi 0, %s64
      %s68 = sphi 0, %s67
      %s84 = sphi 0, %s68
    $region4: #{tpu_custom_call.1} parent=1 // loop_header_branch
      %15 = sbr.rel (%p13) target = $region8
    $region5: #{tpu_custom_call.1} parent=1 // loop_body
      %s17 = ssub.s32 %s12, 1
      %s18 = ssub.s32 %s12, 2
      %s19 = sadd.s32 %s12, 1
      %s21 = sadd.s32 %s20, 1
      %p24 = scmp.eq.s32.totalorder %s12, 5
      %p25 = scmp.ne.s32.totalorder %s20, %s22
      %p26 = scmp.eq.s32.totalorder %s12, 0
      %p27 = por %p25, %p26
      %p28 = scmp.ne.s32.totalorder %s20, %s22
      %p29 = scmp.eq.s32.totalorder %s17, 5
      %p30 = por %p28, %p29
      %p31 = scmp.ne.s32.totalorder %s22, %s23
      %p32 = scmp.eq.s32.totalorder %s17, 0
      %p33 = por %p31, %p32
      %p34 = scmp.ne.s32.totalorder %s22, %s23
      %p35 = scmp.eq.s32.totalorder %s18, 5
      %p36 = por %p34, %p35
      %p38 = scmp.ne.s32.totalorder %s23, %s37
      %p39 = scmp.eq.s32.totalorder %s18, 0
      %p40 = por %p38, %p39
      %s42 = sadd.s32 %s41, 1
      %p45 = scmp.eq.s32.totalorder %s12, 5
      %p46 = scmp.ne.s32.totalorder %s41, %s43
      %p47 = scmp.eq.s32.totalorder %s12, 0
      %p48 = por %p46, %p47
      %p49 = scmp.ne.s32.totalorder %s41, %s43
      %p50 = scmp.eq.s32.totalorder %s17, 5
      %p51 = por %p49, %p50
      %p52 = scmp.ne.s32.totalorder %s43, %s44
      %p53 = scmp.eq.s32.totalorder %s17, 0
      %p54 = por %p52, %p53
      %p55 = scmp.ne.s32.totalorder %s43, %s44
      %p56 = scmp.eq.s32.totalorder %s18, 5
      %p57 = por %p55, %p56
      %p59 = scmp.ne.s32.totalorder %s44, %s58
      %p60 = scmp.eq.s32.totalorder %s18, 0
      %p61 = por %p59, %p60
      %s62 = ssub.s32 %s12, %s19
      %p63 = scmp.eq.s32.totalorder %s62, 0
      %s65 = sadd.s32 %s64, 1
      %s66 = scalar_select %p63, %s64, %s65
      %p69 = pneg %p63
      %p70 = scmp.eq.s32.totalorder %s12, 5
      %p71 = por %p69, %p70
      %p72 = scmp.ne.s32.totalorder %s64, %s67
      %p73 = scmp.eq.s32.totalorder %s12, 0
      %p74 = por %p72, %p73
      %p75 = scmp.ne.s32.totalorder %s64, %s67
      %p76 = scmp.eq.s32.totalorder %s17, 5
      %p77 = por %p75, %p76
      %p78 = scmp.ne.s32.totalorder %s67, %s68
      %p79 = scmp.eq.s32.totalorder %s17, 0
      %p80 = por %p78, %p79
      %p81 = scmp.ne.s32.totalorder %s67, %s68
      %p82 = scmp.eq.s32.totalorder %s18, 5
      %p83 = por %p81, %p82
      %p85 = scmp.ne.s32.totalorder %s68, %s84
      %p86 = scmp.eq.s32.totalorder %s18, 0
      %p87 = por %p85, %p86
      %p88 = scmp.le.s32.totalorder 1, %s12
      %p89 = scmp.lt.s32.totalorder %s12, 7
      %p90 = pnand %p88, %p89
      %p91 = pneg %p90
      // Predicated region
      $region9: #{tpu_custom_call.1} parent=5 // pred_check
        _
      $region10: #{tpu_custom_call.1} parent=5 // pred_check_branch
        %93 = sbr.rel (%p90) target = $region12
      $region11: #{tpu_custom_call.1} parent=5 // pred_region
        %s94 = ssub.s32 %s12, 1
        // Predicated region
        $region13: #{tpu_custom_call.1} parent=11 // pred_check
          %p95 = pneg %p33
        $region14: #{tpu_custom_call.1} parent=11 // pred_check_branch
          %97 = sbr.rel (%p95) target = $region16
        $region15: #{tpu_custom_call.1} parent=11 // pred_region
          _
        $region16: #{tpu_custom_call.1} parent=11 // pred_fallthru
          _
        // Predicated region
        $region17: #{tpu_custom_call.1} parent=11 // pred_check
          %p98 = pneg %p54
        $region18: #{tpu_custom_call.1} parent=11 // pred_check_branch
          %100 = sbr.rel (%p98) target = $region20
        $region19: #{tpu_custom_call.1} parent=11 // pred_region
          %102 = vsyncadd [#allocation3], 0
          %s103 = sshll.u32 %s1, 4
          %s104 = int_to_ptr.hbm [resolvable:$true] %s103
          %s105 = sshll.u32 [#allocation2], 4
          %s106 = int_to_ptr.vmem [resolvable:$true] %s105
          %111 = dma.hbm_to_vmem [thread:$0]  %s104, 62208, %s106, [#allocation3], 128, 128, 8
        $region20: #{tpu_custom_call.1} parent=11 // pred_fallthru
          _
      $region12: #{tpu_custom_call.1} parent=5 // pred_fallthru
        _
      %p112 = scmp.lt.s32.totalorder %s12, 6
      // Predicated region
      $region21: #{tpu_custom_call.1} parent=5 // pred_check
        %p113 = pneg %p112
      $region22: #{tpu_custom_call.1} parent=5 // pred_check_branch
        %115 = sbr.rel (%p113) target = $region24
      $region23: #{tpu_custom_call.1} parent=5 // pred_region
        _
      $region24: #{tpu_custom_call.1} parent=5 // pred_fallthru
        _
      %p116 = scmp.le.s32.totalorder 1, %s12
      %p117 = scmp.lt.s32.totalorder %s12, 7
      %p118 = pnand %p116, %p117
      %p119 = pneg %p118
      // Predicated region
      $region25: #{tpu_custom_call.1} parent=5 // pred_check
        _
      $region26: #{tpu_custom_call.1} parent=5 // pred_check_branch
        %121 = sbr.rel (%p118) target = $region28
      $region27: #{tpu_custom_call.1} parent=5 // pred_region
        %s122 = ssub.s32 %s12, 1
        // Predicated region
        $region29: #{tpu_custom_call.1} parent=27 // pred_check
          %p123 = pneg %p54
        $region30: #{tpu_custom_call.1} parent=27 // pred_check_branch
          %125 = sbr.rel (%p123) target = $region32
        $region31: #{tpu_custom_call.1} parent=27 // pred_region
          %127 = dma.done [#allocation3], 62208
        $region32: #{tpu_custom_call.1} parent=27 // pred_fallthru
          _
        %p128 = pneg %p33
        %p129 = pneg %p30
        %p130 = pneg %p54
        %p131 = pneg %p51
        %p132 = pneg %p80
        %p133 = pneg %p77
        %s134 = sand.u32 %s67, 1
        %s135 = scalar_lea.sflag [#allocation4], %s134
        %s136 = sand.u32 %s67, 1
        %s137 = smul.addr %s136, 32
        %s138 = scalar_lea.vmem [#allocation5], %s137
        %s139 = smul.u32 %s17, 48
        %s140 = scalar_lea.vmem %s0, %s139
        %v141 = vld [vmem:[%s140] sm:$0xff]
        %v142 = vld [vmem:[%s140 + $0x8] sm:$0xff]
        %v143 = vld [vmem:[%s140 + $0x10] sm:$0x3]
        %v144 = vld [vmem:[%s140 + $0x18] sm:$0xff]
        %v145 = vld [vmem:[%s140 + $0x20] sm:$0xff]
        %v146 = vld [vmem:[%s140 + $0x28] sm:$0x3]
        %s147 = smul.u32 %s17, 648
        %s148 = scalar_lea.vmem [#allocation2], %s147
        %v149 = vld [vmem:[%s148] sm:$0xff]
        %v150 = vld [vmem:[%s148 + $0x8] sm:$0xff]
        %v151 = vld [vmem:[%s148 + $0x10] sm:$0xff]
        %v152 = vld [vmem:[%s148 + $0x18] sm:$0xff]
        %v153 = vld [vmem:[%s148 + $0x20] sm:$0xff]
        %v154 = vld [vmem:[%s148 + $0x28] sm:$0xff]
        %v155 = vld [vmem:[%s148 + $0x30] sm:$0xff]
        %v156 = vld [vmem:[%s148 + $0x38] sm:$0xff]
        %v157 = vld [vmem:[%s148 + $0x40] sm:$0xff]
        %s158 = sadd.s32 72, %s147
        %s159 = scalar_lea.vmem [#allocation2], %s158
        %v160 = vld [vmem:[%s159] sm:$0xff]
        %v161 = vld [vmem:[%s159 + $0x8] sm:$0xff]
        %v162 = vld [vmem:[%s159 + $0x10] sm:$0xff]
        %v163 = vld [vmem:[%s159 + $0x18] sm:$0xff]
        %v164 = vld [vmem:[%s159 + $0x20] sm:$0xff]
        %v165 = vld [vmem:[%s159 + $0x28] sm:$0xff]
        %v166 = vld [vmem:[%s159 + $0x30] sm:$0xff]
        %v167 = vld [vmem:[%s159 + $0x38] sm:$0xff]
        %v168 = vld [vmem:[%s159 + $0x40] sm:$0xff]
        %vm175 = vcmask 1046528
        %v176 = vrot.slane %v141, 1
        %v177 = vrot.slane %v142, 1
        %v178 = vsel %vm175, %v176, %v177
        %v179 = vrot.slane %v143, 1
        %v180 = vsel %vm175, %v177, %v179
        %v181 = vrot.slane %v144, 1
        %v182 = vrot.slane %v145, 1
        %v183 = vsel %vm175, %v181, %v182
        %v184 = vrot.slane %v146, 1
        %v185 = vsel %vm175, %v182, %v184
        %vm186 = vcmask 588800
        %v187 = vsel %vm186, %v178, 0
        %v189 = vsel %vm186, %v180, 0
        %v191 = vsel %vm186, %v183, 0
        %v193 = vsel %vm186, %v185, 0
        %195 = vmatpush.msra.mxu0 0.0
        %196 = vmatpush.msra.mxu0 0.0
        %197 = vmatpush.msra.mxu0 0.0
        %198 = vmatpush.msra.mxu0 0.0
        %199 = vmatpush.msra.mxu0 0.0
        %200 = vmatpush.msra.mxu0 0.0
        %201 = vmatpush.msra.mxu0 0.0
        %202 = vmatpush.msra.mxu0 %v168
        %203 = vmatpush.msra.mxu0 %v167
        %204 = vmatpush.msra.mxu0 %v166
        %205 = vmatpush.msra.mxu0 %v165
        %206 = vmatpush.msra.mxu0 %v164
        %207 = vmatpush.msra.mxu0 %v163
        %208 = vmatpush.msra.mxu0 %v162
        %209 = vmatpush.msra.mxu0 %v161
        %210 = vmatpush.msra.mxu0 %v160
        %211 = vmatmul.f32.gmra.mxu0 %v187
        %v212 = vpop.f32.mrf.mxu0
        %v213 = vadd.f32 0.0, %v212
        %214 = vmatmul.f32.gmra.mxu0 %v189
        %v215 = vpop.f32.mrf.mxu0
        %v216 = vadd.f32 0.0, %v215
        %217 = vmatmul.f32.gmra.mxu0 %v191
        %v218 = vpop.f32.mrf.mxu0
        %v219 = vadd.f32 0.0, %v218
        %220 = vmatmul.f32.gmra.mxu0 %v193
        %v221 = vpop.f32.mrf.mxu0
        %v222 = vadd.f32 0.0, %v221
        %223 = vdwg.mxu0
        %v224 = vsel %vm186, %v141, 0
        %v226 = vsel %vm186, %v142, 0
        %v228 = vsel %vm186, %v144, 0
        %v230 = vsel %vm186, %v145, 0
        %232 = vmatpush.msra.mxu0 0.0
        %233 = vmatpush.msra.mxu0 0.0
        %234 = vmatpush.msra.mxu0 0.0
        %235 = vmatpush.msra.mxu0 0.0
        %236 = vmatpush.msra.mxu0 0.0
        %237 = vmatpush.msra.mxu0 0.0
        %238 = vmatpush.msra.mxu0 0.0
        %239 = vmatpush.msra.mxu0 %v157
        %240 = vmatpush.msra.mxu0 %v156
        %241 = vmatpush.msra.mxu0 %v155
        %242 = vmatpush.msra.mxu0 %v154
        %243 = vmatpush.msra.mxu0 %v153
        %244 = vmatpush.msra.mxu0 %v152
        %245 = vmatpush.msra.mxu0 %v151
        %246 = vmatpush.msra.mxu0 %v150
        %247 = vmatpush.msra.mxu0 %v149
        %248 = vmatmul.f32.gmra.mxu0 %v224
        %v249 = vpop.f32.mrf.mxu0
        %v250 = vadd.f32 %v213, %v249
        %251 = vmatmul.f32.gmra.mxu0 %v226
        %v252 = vpop.f32.mrf.mxu0
        %v253 = vadd.f32 %v216, %v252
        %254 = vmatmul.f32.gmra.mxu0 %v228
        %v255 = vpop.f32.mrf.mxu0
        %v256 = vadd.f32 %v219, %v255
        %257 = vmatmul.f32.gmra.mxu0 %v230
        %v258 = vpop.f32.mrf.mxu0
        %v259 = vadd.f32 %v222, %v258
        %260 = vdwg.mxu0
        %s261 = sadd.s32 144, %s147
        %s262 = scalar_lea.vmem [#allocation2], %s261
        %v263 = vld [vmem:[%s262] sm:$0xff]
        %v264 = vld [vmem:[%s262 + $0x8] sm:$0xff]
        %v265 = vld [vmem:[%s262 + $0x10] sm:$0xff]
        %v266 = vld [vmem:[%s262 + $0x18] sm:$0xff]
        %v267 = vld [vmem:[%s262 + $0x20] sm:$0xff]
        %v268 = vld [vmem:[%s262 + $0x28] sm:$0xff]
        %v269 = vld [vmem:[%s262 + $0x30] sm:$0xff]
        %v270 = vld [vmem:[%s262 + $0x38] sm:$0xff]
        %v271 = vld [vmem:[%s262 + $0x40] sm:$0xff]
        %vm272 = vcmask 1045504
        %v273 = vrot.slane %v141, 2
        %v274 = vrot.slane %v142, 2
        %v275 = vsel %vm272, %v273, %v274
        %v276 = vrot.slane %v143, 2
        %v277 = vsel %vm272, %v274, %v276
        %v278 = vrot.slane %v144, 2
        %v279 = vrot.slane %v145, 2
        %v280 = vsel %vm272, %v278, %v279
        %v281 = vrot.slane %v146, 2
        %v282 = vsel %vm272, %v279, %v281
        %v283 = vsel %vm186, %v275, 0
        %v285 = vsel %vm186, %v277, 0
        %v287 = vsel %vm186, %v280, 0
        %v289 = vsel %vm186, %v282, 0
        %291 = vmatpush.msra.mxu0 0.0
        %292 = vmatpush.msra.mxu0 0.0
        %293 = vmatpush.msra.mxu0 0.0
        %294 = vmatpush.msra.mxu0 0.0
        %295 = vmatpush.msra.mxu0 0.0
        %296 = vmatpush.msra.mxu0 0.0
        %297 = vmatpush.msra.mxu0 0.0
        %298 = vmatpush.msra.mxu0 %v271
        %299 = vmatpush.msra.mxu0 %v270
        %300 = vmatpush.msra.mxu0 %v269
        %301 = vmatpush.msra.mxu0 %v268
        %302 = vmatpush.msra.mxu0 %v267
        %303 = vmatpush.msra.mxu0 %v266
        %304 = vmatpush.msra.mxu0 %v265
        %305 = vmatpush.msra.mxu0 %v264
        %306 = vmatpush.msra.mxu0 %v263
        %307 = vmatmul.f32.gmra.mxu0 %v283
        %v308 = vpop.f32.mrf.mxu0
        %v309 = vadd.f32 0.0, %v308
        %310 = vmatmul.f32.gmra.mxu0 %v285
        %v311 = vpop.f32.mrf.mxu0
        %v312 = vadd.f32 0.0, %v311
        %313 = vmatmul.f32.gmra.mxu0 %v287
        %v314 = vpop.f32.mrf.mxu0
        %v315 = vadd.f32 0.0, %v314
        %316 = vmatmul.f32.gmra.mxu0 %v289
        %v317 = vpop.f32.mrf.mxu0
        %v318 = vadd.f32 0.0, %v317
        %319 = vdwg.mxu0
        %v320 = vadd.f32 %v250, %v309
        %v321 = vadd.f32 %v253, %v312
        %v322 = vadd.f32 %v256, %v315
        %v323 = vadd.f32 %v259, %v318
        %s324 = sadd.s32 %s17, 1
        %s325 = smul.u32 %s324, 48
        %s326 = scalar_lea.vmem %s0, %s325
        %v327 = vld [vmem:[%s326] sm:$0xff]
        %v328 = vld [vmem:[%s326 + $0x8] sm:$0xff]
        %v329 = vld [vmem:[%s326 + $0x10] sm:$0x3]
        %v330 = vld [vmem:[%s326 + $0x18] sm:$0xff]
        %v331 = vld [vmem:[%s326 + $0x20] sm:$0xff]
        %v332 = vld [vmem:[%s326 + $0x28] sm:$0x3]
        %s333 = sadd.s32 216, %s147
        %s334 = scalar_lea.vmem [#allocation2], %s333
        %v335 = vld [vmem:[%s334] sm:$0xff]
        %v336 = vld [vmem:[%s334 + $0x8] sm:$0xff]
        %v337 = vld [vmem:[%s334 + $0x10] sm:$0xff]
        %v338 = vld [vmem:[%s334 + $0x18] sm:$0xff]
        %v339 = vld [vmem:[%s334 + $0x20] sm:$0xff]
        %v340 = vld [vmem:[%s334 + $0x28] sm:$0xff]
        %v341 = vld [vmem:[%s334 + $0x30] sm:$0xff]
        %v342 = vld [vmem:[%s334 + $0x38] sm:$0xff]
        %v343 = vld [vmem:[%s334 + $0x40] sm:$0xff]
        %v345 = vsel %vm186, %v327, 0
        %v348 = vsel %vm186, %v328, 0
        %v351 = vsel %vm186, %v330, 0
        %v354 = vsel %vm186, %v331, 0
        %356 = vmatpush.msra.mxu0 0.0
        %357 = vmatpush.msra.mxu0 0.0
        %358 = vmatpush.msra.mxu0 0.0
        %359 = vmatpush.msra.mxu0 0.0
        %360 = vmatpush.msra.mxu0 0.0
        %361 = vmatpush.msra.mxu0 0.0
        %362 = vmatpush.msra.mxu0 0.0
        %363 = vmatpush.msra.mxu0 %v343
        %364 = vmatpush.msra.mxu0 %v342
        %365 = vmatpush.msra.mxu0 %v341
        %366 = vmatpush.msra.mxu0 %v340
        %367 = vmatpush.msra.mxu0 %v339
        %368 = vmatpush.msra.mxu0 %v338
        %369 = vmatpush.msra.mxu0 %v337
        %370 = vmatpush.msra.mxu0 %v336
        %371 = vmatpush.msra.mxu0 %v335
        %372 = vmatmul.f32.gmra.mxu0 %v345
        %v373 = vpop.f32.mrf.mxu0
        %v374 = vadd.f32 0.0, %v373
        %375 = vmatmul.f32.gmra.mxu0 %v348
        %v376 = vpop.f32.mrf.mxu0
        %v377 = vadd.f32 0.0, %v376
        %378 = vmatmul.f32.gmra.mxu0 %v351
        %v379 = vpop.f32.mrf.mxu0
        %v380 = vadd.f32 0.0, %v379
        %381 = vmatmul.f32.gmra.mxu0 %v354
        %v382 = vpop.f32.mrf.mxu0
        %v383 = vadd.f32 0.0, %v382
        %384 = vdwg.mxu0
        %v385 = vadd.f32 %v320, %v374
        %v386 = vadd.f32 %v321, %v377
        %v387 = vadd.f32 %v322, %v380
        %v388 = vadd.f32 %v323, %v383
        %s389 = sadd.s32 288, %s147
        %s390 = scalar_lea.vmem [#allocation2], %s389
        %v391 = vld [vmem:[%s390] sm:$0xff]
        %v392 = vld [vmem:[%s390 + $0x8] sm:$0xff]
        %v393 = vld [vmem:[%s390 + $0x10] sm:$0xff]
        %v394 = vld [vmem:[%s390 + $0x18] sm:$0xff]
        %v395 = vld [vmem:[%s390 + $0x20] sm:$0xff]
        %v396 = vld [vmem:[%s390 + $0x28] sm:$0xff]
        %v397 = vld [vmem:[%s390 + $0x30] sm:$0xff]
        %v398 = vld [vmem:[%s390 + $0x38] sm:$0xff]
        %v399 = vld [vmem:[%s390 + $0x40] sm:$0xff]
        %v402 = vrot.slane %v327, 1
        %v403 = vrot.slane %v328, 1
        %v404 = vsel %vm175, %v402, %v403
        %v405 = vrot.slane %v329, 1
        %v406 = vsel %vm175, %v403, %v405
        %v407 = vrot.slane %v330, 1
        %v408 = vrot.slane %v331, 1
        %v409 = vsel %vm175, %v407, %v408
        %v410 = vrot.slane %v332, 1
        %v411 = vsel %vm175, %v408, %v410
        %v412 = vsel %vm186, %v404, 0
        %v414 = vsel %vm186, %v406, 0
        %v416 = vsel %vm186, %v409, 0
        %v418 = vsel %vm186, %v411, 0
        %420 = vmatpush.msra.mxu0 0.0
        %421 = vmatpush.msra.mxu0 0.0
        %422 = vmatpush.msra.mxu0 0.0
        %423 = vmatpush.msra.mxu0 0.0
        %424 = vmatpush.msra.mxu0 0.0
        %425 = vmatpush.msra.mxu0 0.0
        %426 = vmatpush.msra.mxu0 0.0
        %427 = vmatpush.msra.mxu0 %v399
        %428 = vmatpush.msra.mxu0 %v398
        %429 = vmatpush.msra.mxu0 %v397
        %430 = vmatpush.msra.mxu0 %v396
        %431 = vmatpush.msra.mxu0 %v395
        %432 = vmatpush.msra.mxu0 %v394
        %433 = vmatpush.msra.mxu0 %v393
        %434 = vmatpush.msra.mxu0 %v392
        %435 = vmatpush.msra.mxu0 %v391
        %436 = vmatmul.f32.gmra.mxu0 %v412
        %v437 = vpop.f32.mrf.mxu0
        %v438 = vadd.f32 0.0, %v437
        %439 = vmatmul.f32.gmra.mxu0 %v414
        %v440 = vpop.f32.mrf.mxu0
        %v441 = vadd.f32 0.0, %v440
        %442 = vmatmul.f32.gmra.mxu0 %v416
        %v443 = vpop.f32.mrf.mxu0
        %v444 = vadd.f32 0.0, %v443
        %445 = vmatmul.f32.gmra.mxu0 %v418
        %v446 = vpop.f32.mrf.mxu0
        %v447 = vadd.f32 0.0, %v446
        %448 = vdwg.mxu0
        %v449 = vadd.f32 %v385, %v438
        %v450 = vadd.f32 %v386, %v441
        %v451 = vadd.f32 %v387, %v444
        %v452 = vadd.f32 %v388, %v447
        %s453 = sadd.s32 360, %s147
        %s454 = scalar_lea.vmem [#allocation2], %s453
        %v455 = vld [vmem:[%s454] sm:$0xff]
        %v456 = vld [vmem:[%s454 + $0x8] sm:$0xff]
        %v457 = vld [vmem:[%s454 + $0x10] sm:$0xff]
        %v458 = vld [vmem:[%s454 + $0x18] sm:$0xff]
        %v459 = vld [vmem:[%s454 + $0x20] sm:$0xff]
        %v460 = vld [vmem:[%s454 + $0x28] sm:$0xff]
        %v461 = vld [vmem:[%s454 + $0x30] sm:$0xff]
        %v462 = vld [vmem:[%s454 + $0x38] sm:$0xff]
        %v463 = vld [vmem:[%s454 + $0x40] sm:$0xff]
        %v464 = vrot.slane %v327, 2
        %v465 = vrot.slane %v328, 2
        %v466 = vsel %vm272, %v464, %v465
        %v467 = vrot.slane %v329, 2
        %v468 = vsel %vm272, %v465, %v467
        %v469 = vrot.slane %v330, 2
        %v470 = vrot.slane %v331, 2
        %v471 = vsel %vm272, %v469, %v470
        %v472 = vrot.slane %v332, 2
        %v473 = vsel %vm272, %v470, %v472
        %v474 = vsel %vm186, %v466, 0
        %v476 = vsel %vm186, %v468, 0
        %v478 = vsel %vm186, %v471, 0
        %v480 = vsel %vm186, %v473, 0
        %482 = vmatpush.msra.mxu0 0.0
        %483 = vmatpush.msra.mxu0 0.0
        %484 = vmatpush.msra.mxu0 0.0
        %485 = vmatpush.msra.mxu0 0.0
        %486 = vmatpush.msra.mxu0 0.0
        %487 = vmatpush.msra.mxu0 0.0
        %488 = vmatpush.msra.mxu0 0.0
        %489 = vmatpush.msra.mxu0 %v463
        %490 = vmatpush.msra.mxu0 %v462
        %491 = vmatpush.msra.mxu0 %v461
        %492 = vmatpush.msra.mxu0 %v460
        %493 = vmatpush.msra.mxu0 %v459
        %494 = vmatpush.msra.mxu0 %v458
        %495 = vmatpush.msra.mxu0 %v457
        %496 = vmatpush.msra.mxu0 %v456
        %497 = vmatpush.msra.mxu0 %v455
        %498 = vmatmul.f32.gmra.mxu0 %v474
        %v499 = vpop.f32.mrf.mxu0
        %v500 = vadd.f32 0.0, %v499
        %501 = vmatmul.f32.gmra.mxu0 %v476
        %v502 = vpop.f32.mrf.mxu0
        %v503 = vadd.f32 0.0, %v502
        %504 = vmatmul.f32.gmra.mxu0 %v478
        %v505 = vpop.f32.mrf.mxu0
        %v506 = vadd.f32 0.0, %v505
        %507 = vmatmul.f32.gmra.mxu0 %v480
        %v508 = vpop.f32.mrf.mxu0
        %v509 = vadd.f32 0.0, %v508
        %510 = vdwg.mxu0
        %v511 = vadd.f32 %v449, %v500
        %v512 = vadd.f32 %v450, %v503
        %v513 = vadd.f32 %v451, %v506
        %v514 = vadd.f32 %v452, %v509
        %s515 = sadd.s32 %s17, 2
        %s516 = smul.u32 %s515, 48
        %s517 = scalar_lea.vmem %s0, %s516
        %v518 = vld [vmem:[%s517] sm:$0xff]
        %v519 = vld [vmem:[%s517 + $0x8] sm:$0xff]
        %v520 = vld [vmem:[%s517 + $0x10] sm:$0x3]
        %v521 = vld [vmem:[%s517 + $0x18] sm:$0xff]
        %v522 = vld [vmem:[%s517 + $0x20] sm:$0xff]
        %v523 = vld [vmem:[%s517 + $0x28] sm:$0x3]
        %s524 = sadd.s32 432, %s147
        %s525 = scalar_lea.vmem [#allocation2], %s524
        %v526 = vld [vmem:[%s525] sm:$0xff]
        %v527 = vld [vmem:[%s525 + $0x8] sm:$0xff]
        %v528 = vld [vmem:[%s525 + $0x10] sm:$0xff]
        %v529 = vld [vmem:[%s525 + $0x18] sm:$0xff]
        %v530 = vld [vmem:[%s525 + $0x20] sm:$0xff]
        %v531 = vld [vmem:[%s525 + $0x28] sm:$0xff]
        %v532 = vld [vmem:[%s525 + $0x30] sm:$0xff]
        %v533 = vld [vmem:[%s525 + $0x38] sm:$0xff]
        %v534 = vld [vmem:[%s525 + $0x40] sm:$0xff]
        %v536 = vsel %vm186, %v518, 0
        %v539 = vsel %vm186, %v519, 0
        %v542 = vsel %vm186, %v521, 0
        %v545 = vsel %vm186, %v522, 0
        %547 = vmatpush.msra.mxu0 0.0
        %548 = vmatpush.msra.mxu0 0.0
        %549 = vmatpush.msra.mxu0 0.0
        %550 = vmatpush.msra.mxu0 0.0
        %551 = vmatpush.msra.mxu0 0.0
        %552 = vmatpush.msra.mxu0 0.0
        %553 = vmatpush.msra.mxu0 0.0
        %554 = vmatpush.msra.mxu0 %v534
        %555 = vmatpush.msra.mxu0 %v533
        %556 = vmatpush.msra.mxu0 %v532
        %557 = vmatpush.msra.mxu0 %v531
        %558 = vmatpush.msra.mxu0 %v530
        %559 = vmatpush.msra.mxu0 %v529
        %560 = vmatpush.msra.mxu0 %v528
        %561 = vmatpush.msra.mxu0 %v527
        %562 = vmatpush.msra.mxu0 %v526
        %563 = vmatmul.f32.gmra.mxu0 %v536
        %v564 = vpop.f32.mrf.mxu0
        %v565 = vadd.f32 0.0, %v564
        %566 = vmatmul.f32.gmra.mxu0 %v539
        %v567 = vpop.f32.mrf.mxu0
        %v568 = vadd.f32 0.0, %v567
        %569 = vmatmul.f32.gmra.mxu0 %v542
        %v570 = vpop.f32.mrf.mxu0
        %v571 = vadd.f32 0.0, %v570
        %572 = vmatmul.f32.gmra.mxu0 %v545
        %v573 = vpop.f32.mrf.mxu0
        %v574 = vadd.f32 0.0, %v573
        %575 = vdwg.mxu0
        %v576 = vadd.f32 %v511, %v565
        %v577 = vadd.f32 %v512, %v568
        %v578 = vadd.f32 %v513, %v571
        %v579 = vadd.f32 %v514, %v574
        %s580 = sadd.s32 504, %s147
        %s581 = scalar_lea.vmem [#allocation2], %s580
        %v582 = vld [vmem:[%s581] sm:$0xff]
        %v583 = vld [vmem:[%s581 + $0x8] sm:$0xff]
        %v584 = vld [vmem:[%s581 + $0x10] sm:$0xff]
        %v585 = vld [vmem:[%s581 + $0x18] sm:$0xff]
        %v586 = vld [vmem:[%s581 + $0x20] sm:$0xff]
        %v587 = vld [vmem:[%s581 + $0x28] sm:$0xff]
        %v588 = vld [vmem:[%s581 + $0x30] sm:$0xff]
        %v589 = vld [vmem:[%s581 + $0x38] sm:$0xff]
        %v590 = vld [vmem:[%s581 + $0x40] sm:$0xff]
        %v593 = vrot.slane %v518, 1
        %v594 = vrot.slane %v519, 1
        %v595 = vsel %vm175, %v593, %v594
        %v596 = vrot.slane %v520, 1
        %v597 = vsel %vm175, %v594, %v596
        %v598 = vrot.slane %v521, 1
        %v599 = vrot.slane %v522, 1
        %v600 = vsel %vm175, %v598, %v599
        %v601 = vrot.slane %v523, 1
        %v602 = vsel %vm175, %v599, %v601
        %v603 = vsel %vm186, %v595, 0
        %v605 = vsel %vm186, %v597, 0
        %v607 = vsel %vm186, %v600, 0
        %v609 = vsel %vm186, %v602, 0
        %611 = vmatpush.msra.mxu0 0.0
        %612 = vmatpush.msra.mxu0 0.0
        %613 = vmatpush.msra.mxu0 0.0
        %614 = vmatpush.msra.mxu0 0.0
        %615 = vmatpush.msra.mxu0 0.0
        %616 = vmatpush.msra.mxu0 0.0
        %617 = vmatpush.msra.mxu0 0.0
        %618 = vmatpush.msra.mxu0 %v590
        %619 = vmatpush.msra.mxu0 %v589
        %620 = vmatpush.msra.mxu0 %v588
        %621 = vmatpush.msra.mxu0 %v587
        %622 = vmatpush.msra.mxu0 %v586
        %623 = vmatpush.msra.mxu0 %v585
        %624 = vmatpush.msra.mxu0 %v584
        %625 = vmatpush.msra.mxu0 %v583
        %626 = vmatpush.msra.mxu0 %v582
        %627 = vmatmul.f32.gmra.mxu0 %v603
        %v628 = vpop.f32.mrf.mxu0
        %v629 = vadd.f32 0.0, %v628
        %630 = vmatmul.f32.gmra.mxu0 %v605
        %v631 = vpop.f32.mrf.mxu0
        %v632 = vadd.f32 0.0, %v631
        %633 = vmatmul.f32.gmra.mxu0 %v607
        %v634 = vpop.f32.mrf.mxu0
        %v635 = vadd.f32 0.0, %v634
        %636 = vmatmul.f32.gmra.mxu0 %v609
        %v637 = vpop.f32.mrf.mxu0
        %v638 = vadd.f32 0.0, %v637
        %639 = vdwg.mxu0
        %v640 = vadd.f32 %v576, %v629
        %v641 = vadd.f32 %v577, %v632
        %v642 = vadd.f32 %v578, %v635
        %v643 = vadd.f32 %v579, %v638
        %s644 = sadd.s32 576, %s147
        %s645 = scalar_lea.vmem [#allocation2], %s644
        %v646 = vld [vmem:[%s645] sm:$0xff]
        %v647 = vld [vmem:[%s645 + $0x8] sm:$0xff]
        %v648 = vld [vmem:[%s645 + $0x10] sm:$0xff]
        %v649 = vld [vmem:[%s645 + $0x18] sm:$0xff]
        %v650 = vld [vmem:[%s645 + $0x20] sm:$0xff]
        %v651 = vld [vmem:[%s645 + $0x28] sm:$0xff]
        %v652 = vld [vmem:[%s645 + $0x30] sm:$0xff]
        %v653 = vld [vmem:[%s645 + $0x38] sm:$0xff]
        %v654 = vld [vmem:[%s645 + $0x40] sm:$0xff]
        %v655 = vrot.slane %v518, 2
        %v656 = vrot.slane %v519, 2
        %v657 = vsel %vm272, %v655, %v656
        %v658 = vrot.slane %v520, 2
        %v659 = vsel %vm272, %v656, %v658
        %v660 = vrot.slane %v521, 2
        %v661 = vrot.slane %v522, 2
        %v662 = vsel %vm272, %v660, %v661
        %v663 = vrot.slane %v523, 2
        %v664 = vsel %vm272, %v661, %v663
        %v665 = vsel %vm186, %v657, 0
        %v667 = vsel %vm186, %v659, 0
        %v669 = vsel %vm186, %v662, 0
        %v671 = vsel %vm186, %v664, 0
        %673 = vmatpush.msra.mxu0 0.0
        %674 = vmatpush.msra.mxu0 0.0
        %675 = vmatpush.msra.mxu0 0.0
        %676 = vmatpush.msra.mxu0 0.0
        %677 = vmatpush.msra.mxu0 0.0
        %678 = vmatpush.msra.mxu0 0.0
        %679 = vmatpush.msra.mxu0 0.0
        %680 = vmatpush.msra.mxu0 %v654
        %681 = vmatpush.msra.mxu0 %v653
        %682 = vmatpush.msra.mxu0 %v652
        %683 = vmatpush.msra.mxu0 %v651
        %684 = vmatpush.msra.mxu0 %v650
        %685 = vmatpush.msra.mxu0 %v649
        %686 = vmatpush.msra.mxu0 %v648
        %687 = vmatpush.msra.mxu0 %v647
        %688 = vmatpush.msra.mxu0 %v646
        %689 = vmatmul.f32.gmra.mxu0 %v665
        %v690 = vpop.f32.mrf.mxu0
        %v691 = vadd.f32 0.0, %v690
        %692 = vmatmul.f32.gmra.mxu0 %v667
        %v693 = vpop.f32.mrf.mxu0
        %v694 = vadd.f32 0.0, %v693
        %695 = vmatmul.f32.gmra.mxu0 %v669
        %v696 = vpop.f32.mrf.mxu0
        %v697 = vadd.f32 0.0, %v696
        %698 = vmatmul.f32.gmra.mxu0 %v671
        %v699 = vpop.f32.mrf.mxu0
        %v700 = vadd.f32 0.0, %v699
        %701 = vdwg.mxu0
        %v702 = vadd.f32 %v640, %v691
        %v703 = vadd.f32 %v641, %v694
        %v704 = vadd.f32 %v642, %v697
        %v705 = vadd.f32 %v643, %v700
        %vm706 = vcmp.gt.f32.partialorder %v702, 0.0
        %vm707 = vcmp.gt.f32.partialorder %v703, 0.0
        %vm708 = vcmp.gt.f32.partialorder %v704, 0.0
        %vm709 = vcmp.gt.f32.partialorder %v705, 0.0
        %v710 = vmul.f32 %v702, 0.2
        %v711 = vmul.f32 %v703, 0.2
        %v712 = vmul.f32 %v704, 0.2
        %v713 = vmul.f32 %v705, 0.2
        %v714 = vsel %vm706, %v702, %v710
        %v715 = vsel %vm707, %v703, %v711
        %v716 = vsel %vm708, %v704, %v712
        %v717 = vsel %vm709, %v705, %v713
        %718 = vst [vmem:[%s138] sm:$0xff] %v714
        %719 = vst [vmem:[%s138 + $0x8] sm:$0xff] %v715
        %720 = vst [vmem:[%s138 + $0x10] sm:$0xff] %v716
        %721 = vst [vmem:[%s138 + $0x18] sm:$0xff] %v717
        %s722 = sand.u32 %s67, 1
        %s723 = scalar_lea.sflag [#allocation4], %s722
        %s724 = sand.u32 %s67, 1
        %s725 = smul.addr %s724, 32
        %s726 = scalar_lea.vmem [#allocation5], %s725
        // Predicated region
        $region33: #{tpu_custom_call.1} parent=27 // pred_check
          %p727 = pneg %p77
        $region34: #{tpu_custom_call.1} parent=27 // pred_check_branch
          %729 = sbr.rel (%p727) target = $region36
        $region35: #{tpu_custom_call.1} parent=27 // pred_region
          %731 = vsyncadd %s723, 0
          %s732 = smul.addr %s17, 4
          %s733 = smul.addr %s732, 8
          %s734 = scalar_lea.hbm %s2, %s733
          %s735 = sshll.u32 %s726, 4
          %s736 = int_to_ptr.vmem [resolvable:$true] %s735
          %s737 = sshll.u32 %s734, 4
          %s738 = int_to_ptr.hbm [resolvable:$true] %s737
          %743 = dma.vmem_to_hbm [thread:$0]  %s736, 512, %s738, %s723, 128, 128, 8
        $region36: #{tpu_custom_call.1} parent=27 // pred_fallthru
          _
      $region28: #{tpu_custom_call.1} parent=5 // pred_fallthru
        _
      %p744 = scmp.le.s32.totalorder 2, %s12
      // Predicated region
      $region37: #{tpu_custom_call.1} parent=5 // pred_check
        %p745 = pneg %p744
      $region38: #{tpu_custom_call.1} parent=5 // pred_check_branch
        %747 = sbr.rel (%p745) target = $region40
      $region39: #{tpu_custom_call.1} parent=5 // pred_region
        %s748 = ssub.s32 %s12, 2
        // Predicated region
        $region41: #{tpu_custom_call.1} parent=39 // pred_check
          %p749 = pneg %p83
        $region42: #{tpu_custom_call.1} parent=39 // pred_check_branch
          %751 = sbr.rel (%p749) target = $region44
        $region43: #{tpu_custom_call.1} parent=39 // pred_region
          %s752 = sand.u32 %s68, 1
          %s753 = scalar_lea.sflag [#allocation4], %s752
          %s754 = sand.u32 %s68, 1
          %s755 = smul.addr %s754, 32
          %s756 = scalar_lea.vmem [#allocation5], %s755
          %758 = dma.done %s753, 512
        $region44: #{tpu_custom_call.1} parent=39 // pred_fallthru
          _
      $region40: #{tpu_custom_call.1} parent=5 // pred_fallthru
        _
    $region6: #{tpu_custom_call.1} parent=1 // loop_footer
      %s16 = sadd.s32 1, %s12
    $region7: #{tpu_custom_call.1} parent=1 // loop_footer_branch
      %11 = sbr.rel target = $region3
    $region8: #{tpu_custom_call.1} parent=1 // loop_exit
      _
    %759 = vsyncpa [#allocation3], 1
    %s760 = scalar_lea.sflag [#allocation3], 1
    %761 = vsyncpa %s760, 1
    %762 = vsyncpa [#allocation4], 1
    %s763 = scalar_lea.sflag [#allocation4], 1
    %764 = vsyncpa %s763, 1

</llo_original>
